<compile_context>
chip_gen: v5e
topology: v5e:2x2
jax: 0.10.0
libtpu: 0.0.40
codegen_flags: <defaults>
</compile_context>

<pallas_src>
import jax
import jax.numpy as jnp
from jax.experimental import pallas as pl
from jax.experimental.pallas import tpu as pltpu

LANE = 128
SUBLANE = 8
TARGET_BLOCK_BYTES = 4 << 20  # ~4 MiB per input per grid step


def _round_up(a: int, b: int) -> int:
    return ((a + b - 1) // b) * b


def _make_l1_block_kernel(block_rows: int, rows_in_last: int, needs_mask: bool):
    """Reduce one (block_rows, 128) block of |x - y| into a (1, 1, 128) partial."""

    def _reduce(diff):
        # VPU tree-sum matching the native (8,128) tiling (layout-free reshape),
        # then exactly one cross-sublane (XLU) reduce -> lane-dense (1,128).
        part = diff.reshape(block_rows // SUBLANE, SUBLANE, LANE).sum(axis=0)
        return jnp.sum(part, axis=0, keepdims=True).reshape(1, 1, LANE)

    def kernel(x_ref, y_ref, out_ref):
        # Cast inside the kernel (VPU, free) so HBM traffic stays native-dtype.
        diff = jnp.abs(x_ref[...].astype(jnp.float32) - y_ref[...].astype(jnp.float32))

        if not needs_mask:
            out_ref[...] = _reduce(diff)
        else:
            # Only the LAST grid step pays for the ragged-row mask.
            is_last = pl.program_id(0) == pl.num_programs(0) - 1

            @pl.when(jnp.logical_not(is_last))
            def _():
                out_ref[...] = _reduce(diff)

            @pl.when(is_last)
            def _():
                local_row = jax.lax.broadcasted_iota(jnp.int32, diff.shape, 0)
                masked = jnp.where(local_row < rows_in_last, diff, 0.0)
                out_ref[...] = _reduce(masked)

    return kernel


def l1_loss_pallas(inp: jax.Array, gt: jax.Array, weight: float = 1.0) -> jax.Array:
    """Equivalent of `nn.L1Loss()(inp, gt) * weight` (mean reduction)."""
    assert inp.shape == gt.shape, "L1 requires matching shapes"
    n = int(inp.size)
    if n == 0:
        return jnp.float32(0.0)

    flat_x = inp.reshape(-1)
    flat_y = gt.reshape(-1)

    isx = jnp.dtype(inp.dtype).itemsize
    isy = jnp.dtype(gt.dtype).itemsize

    rows = n // LANE
    tail = n - rows * LANE
    scale = jnp.float32(float(weight) / float(n))

    tail_sum = None
    if tail:
        # Rare ragged lane tail (< 128 elements): plain-JAX sum, added below.
        tx = flat_x[rows * LANE:].astype(jnp.float32)
        ty = flat_y[rows * LANE:].astype(jnp.float32)
        tail_sum = jnp.sum(jnp.abs(tx - ty))

    if rows == 0:
        return tail_sum * scale

    # Minimum sublane alignment for packed dtypes: f32 -> 8, bf16 -> 16, int8 -> 32.
    pack = max(1, 4 // max(1, min(isx, isy)))
    row_align = SUBLANE * pack

    # Size blocks by bytes (~4 MiB of the widest input per step), but keep at
    # least 2 grid steps when the data allows so v7x can use both TensorCores.
    target_rows = max(
        row_align,
        (TARGET_BLOCK_BYTES // (LANE * max(isx, isy))) // row_align * row_align,
    )
    two_way_rows = _round_up(pl.cdiv(rows, 2), row_align)
    block_rows = max(row_align, min(target_rows, two_way_rows))

    num_blocks = pl.cdiv(rows, block_rows)
    needs_mask = (rows % block_rows) != 0
    rows_in_last = rows - (num_blocks - 1) * block_rows

    if tail:
        flat_x = flat_x[: rows * LANE]
        flat_y = flat_y[: rows * LANE]
    x2d = flat_x.reshape(rows, LANE)  # zero-copy when n % 128 == 0 (common case)
    y2d = flat_y.reshape(rows, LANE)

    # 2 inputs x 2 pipeline buffers per step + slack; explicit so large blocks
    # also lower on v5e (16 MiB default scoped) and stay under v7x's 64 MiB.
    step_in_bytes = block_rows * LANE * (isx + isy)
    vmem_limit = int(min(max(16 << 20, 2 * step_in_bytes + (8 << 20)), 32 << 20))

    cost = pl.CostEstimate(
        flops=3 * rows * LANE,
        transcendentals=0,
        bytes_accessed=rows * LANE * (isx + isy) + num_blocks * LANE * 4,
    )

    partials = pl.pallas_call(
        _make_l1_block_kernel(block_rows, rows_in_last, needs_mask),
        out_shape=jax.ShapeDtypeStruct((num_blocks, 1, LANE), jnp.float32),
        grid_spec=pltpu.PrefetchScalarGridSpec(
            num_scalar_prefetch=0,
            grid=(num_blocks,),
            in_specs=[
                pl.BlockSpec((block_rows, LANE), lambda i: (i, 0)),
                pl.BlockSpec((block_rows, LANE), lambda i: (i, 0)),
            ],
            out_specs=pl.BlockSpec((1, 1, LANE), lambda i: (i, 0, 0)),
        ),
        compiler_params=pltpu.CompilerParams(
            dimension_semantics=("parallel",),
            vmem_limit_bytes=vmem_limit,
        ),
        cost_estimate=cost,
    )(x2d, y2d)

    # Tiny final reduction + mean/weight scaling outside the kernel.
    total = jnp.sum(partials)
    if tail:
        total = total + tail_sum
    return total * scale


if __name__ == "__main__":
    key = jax.random.PRNGKey(0)
    k1, k2 = jax.random.split(key)

    # Small NCHW inputs consistent with an image-loss module.
    inp = jax.random.normal(k1, (2, 4, 16, 16), dtype=jnp.float32)
    gt = jax.random.normal(k2, (2, 4, 16, 16), dtype=jnp.float32)

    weight = 1.0  # matches L1(weight=1.0) default

    loss = l1_loss_pallas(inp, gt, weight=weight)
    jax.block_until_ready(loss)

    # Reference check (plain JAX).
    ref = jnp.mean(jnp.abs(inp - gt)) * weight
    assert jnp.allclose(loss, ref, rtol=1e-5, atol=1e-6), (loss, ref)

    print("KERNEL_OK")
</pallas_src>

<mosaic_0001>
module attributes {stable_mosaic.version = 11 : i64} {
  func.func @kernel(%arg0: i32, %arg1: memref<8x128xf32, #tpu.memory_space<vmem>>, %arg2: memref<8x128xf32, #tpu.memory_space<vmem>>, %arg3: memref<1x1x128xf32, #tpu.memory_space<vmem>>) attributes {dimension_semantics = [#tpu.dimension_semantics<parallel>], iteration_bounds = array<i64: 2>, scalar_prefetch = 0 : i64, scratch_operands = 0 : i64, tpu.core_type = #tpu.core_type<tc>, window_params = [{transform_indices = @transform_0, window_bounds = array<i64: 8, 128>}, {transform_indices = @transform_1, window_bounds = array<i64: 8, 128>}, {transform_indices = @transform_2, window_bounds = array<i64: 1, 1, 128>}]} {
    %c0 = arith.constant 0 : index
    %c0_0 = arith.constant 0 : index
    %0 = vector.load %arg1[%c0, %c0_0] : memref<8x128xf32, #tpu.memory_space<vmem>>, vector<8x128xf32>
    %c0_1 = arith.constant 0 : index
    %c0_2 = arith.constant 0 : index
    %1 = vector.load %arg2[%c0_1, %c0_2] : memref<8x128xf32, #tpu.memory_space<vmem>>, vector<8x128xf32>
    %2 = arith.subf %0, %1 : vector<8x128xf32>
    %3 = math.absf %2 : vector<8x128xf32>
    %4 = vector.shape_cast %3 : vector<8x128xf32> to vector<1x8x128xf32>
    %cst = arith.constant dense<0.000000e+00> : vector<8x128xf32>
    %5 = vector.multi_reduction <add>, %4, %cst [0] : vector<1x8x128xf32> to vector<8x128xf32>
    %cst_3 = arith.constant dense<0.000000e+00> : vector<128xf32>
    %6 = vector.multi_reduction <add>, %5, %cst_3 [0] : vector<8x128xf32> to vector<128xf32>
    %7 = vector.shape_cast %6 : vector<128xf32> to vector<1x128xf32>
    %8 = vector.shape_cast %7 : vector<1x128xf32> to vector<1x1x128xf32>
    %c0_4 = arith.constant 0 : index
    %c0_5 = arith.constant 0 : index
    %c0_6 = arith.constant 0 : index
    %9 = vector.load %arg3[%c0_4, %c0_5, %c0_6] : memref<1x1x128xf32, #tpu.memory_space<vmem>>, vector<1x1x128xf32>
    tpu.vector_store %arg3[%c0_4, %c0_5, %c0_6], %8 {strides = array<i32>} : memref<1x1x128xf32, #tpu.memory_space<vmem>>, vector<1x1x128xf32>,
    return
  }
  func.func @transform_0(%arg0: i32) -> (i32, i32) {
    %c0_i32 = arith.constant 0 : i32
    %c0_i32_0 = arith.constant 0 : i32
    return %arg0, %c0_i32 : i32, i32
  }
  func.func @transform_1(%arg0: i32) -> (i32, i32) {
    %c0_i32 = arith.constant 0 : i32
    %c0_i32_0 = arith.constant 0 : i32
    return %arg0, %c0_i32 : i32, i32
  }
  func.func @transform_2(%arg0: i32) -> (i32, i32, i32) {
    %c0_i32 = arith.constant 0 : i32
    %c0_i32_0 = arith.constant 0 : i32
    %c0_i32_1 = arith.constant 0 : i32
    return %arg0, %c0_i32, %c0_i32_0 : i32, i32, i32
  }
}

</mosaic_0001>

<llo_original>
// kernel: tpu_custom_call.1
$region0: #{tpu_custom_call.1}
  #allocation0 [shape = 'u32[]', space=smem, size = 0x4, offset = 0x4, fixed_abs, tag = 'smem constant byte address 0x4 - core index']
  #allocation1 [shape = 'u32[72,128]{1,0:T(1,128)}', space=vmem, size = 0x9000, scoped, tag = 'internal scratch']
  %s0 = inlined_call_operand.hbm [shape: f32[16,128], index: 0, kind: input, shape index: {}]
  %s1 = inlined_call_operand.hbm [shape: f32[16,128], index: 1, kind: input, shape index: {}]
  %s2 = inlined_call_operand.hbm [shape: f32[2,1,128], index: 2, kind: output, shape index: {}]
  %s3 = sld [smem:[#allocation0]]
  $region49: #{tpu_custom_call.1} parent=0
    _
  %s5 = ssub.s32 1, %s3
  %s6 = scalar_select 0, %s5, %s3
  $region1: #{tpu_custom_call.1} parent=0
    #allocation2 [shape = 'u8[8192]{0}', space=vmem, size = 0x2000, scoped, tag = 'input window, operand 0']
    #allocation3 [shape = 's32[2]{0}', space=sflag, size = 0x8, scoped, tag = 'scoped memory for tpu_custom_call.1']
    #allocation4 [shape = 's32[2]{0}', space=sflag, size = 0x8, scoped, tag = 'scoped memory for tpu_custom_call.1']
    #allocation5 [shape = 'u8[8192]{0}', space=vmem, size = 0x2000, scoped, tag = 'input window, operand 1']
    #allocation6 [shape = 's32[2]{0}', space=sflag, size = 0x8, scoped, tag = 'scoped memory for tpu_custom_call.1']
    #allocation7 [shape = 'u8[1024]{0}', space=vmem, size = 0x400, scoped, tag = 'output window, operand 0']
    %7 = vsyncpa [#allocation3], 0
    %s8 = scalar_lea.sflag [#allocation3], 1
    %9 = vsyncpa %s8, 0
    %10 = vsyncpa [#allocation6], 0
    %s11 = scalar_lea.sflag [#allocation6], 1
    %12 = vsyncpa %s11, 0
    %13 = vsyncpa [#allocation4], 0
    %s14 = scalar_lea.sflag [#allocation4], 1
    %15 = vsyncpa %s14, 0
    loop: start=0, step=1, limit=4
    $region2: #{tpu_custom_call.1} parent=1 // loop_pre_header
      _
    $region3: #{tpu_custom_call.1} parent=1 // loop_header
      %s17 = sphi 0, %s21
      %p18 = scmp.ge.s32.totalorder %s17, 4
      %s27 = sphi 0, %s29
      %s30 = sphi 0, %s27
      %s31 = sphi 0, %s30
      %s47 = sphi 0, %s31
      %s53 = sphi 0, %s55
      %s56 = sphi 0, %s53
      %s57 = sphi 0, %s56
      %s73 = sphi 0, %s57
      %s79 = sphi 0, %s81
      %s82 = sphi 0, %s79
      %s83 = sphi 0, %s82
      %s99 = sphi 0, %s83
    $region4: #{tpu_custom_call.1} parent=1 // loop_header_branch
      %20 = sbr.rel (%p18) target = $region8
    $region5: #{tpu_custom_call.1} parent=1 // loop_body
      %s22 = ssub.s32 %s17, 1
      %s23 = ssub.s32 %s17, 2
      %s24 = sadd.s32 %s17, 1
      %s25 = ssub.s32 %s17, %s24
      %p26 = scmp.eq.s32.totalorder %s25, 0
      %s28 = sadd.s32 %s27, 1
      %s29 = scalar_select %p26, %s27, %s28
      %p32 = pneg %p26
      %p33 = scmp.eq.s32.totalorder %s17, 1
      %p34 = por %p32, %p33
      %p35 = scmp.ne.s32.totalorder %s27, %s30
      %p36 = scmp.eq.s32.totalorder %s17, 0
      %p37 = por %p35, %p36
      %p38 = scmp.ne.s32.totalorder %s27, %s30
      %p39 = scmp.eq.s32.totalorder %s22, 1
      %p40 = por %p38, %p39
      %p41 = scmp.ne.s32.totalorder %s30, %s31
      %p42 = scmp.eq.s32.totalorder %s22, 0
      %p43 = por %p41, %p42
      %p44 = scmp.ne.s32.totalorder %s30, %s31
      %p45 = scmp.eq.s32.totalorder %s23, 1
      %p46 = por %p44, %p45
      %p48 = scmp.ne.s32.totalorder %s31, %s47
      %p49 = scmp.eq.s32.totalorder %s23, 0
      %p50 = por %p48, %p49
      %s51 = ssub.s32 %s17, %s24
      %p52 = scmp.eq.s32.totalorder %s51, 0
      %s54 = sadd.s32 %s53, 1
      %s55 = scalar_select %p52, %s53, %s54
      %p58 = pneg %p52
      %p59 = scmp.eq.s32.totalorder %s17, 1
      %p60 = por %p58, %p59
      %p61 = scmp.ne.s32.totalorder %s53, %s56
      %p62 = scmp.eq.s32.totalorder %s17, 0
      %p63 = por %p61, %p62
      %p64 = scmp.ne.s32.totalorder %s53, %s56
      %p65 = scmp.eq.s32.totalorder %s22, 1
      %p66 = por %p64, %p65
      %p67 = scmp.ne.s32.totalorder %s56, %s57
      %p68 = scmp.eq.s32.totalorder %s22, 0
      %p69 = por %p67, %p68
      %p70 = scmp.ne.s32.totalorder %s56, %s57
      %p71 = scmp.eq.s32.totalorder %s23, 1
      %p72 = por %p70, %p71
      %p74 = scmp.ne.s32.totalorder %s57, %s73
      %p75 = scmp.eq.s32.totalorder %s23, 0
      %p76 = por %p74, %p75
      %s77 = ssub.s32 %s17, %s24
      %p78 = scmp.eq.s32.totalorder %s77, 0
      %s80 = sadd.s32 %s79, 1
      %s81 = scalar_select %p78, %s79, %s80
      %p84 = pneg %p78
      %p85 = scmp.eq.s32.totalorder %s17, 1
      %p86 = por %p84, %p85
      %p87 = scmp.ne.s32.totalorder %s79, %s82
      %p88 = scmp.eq.s32.totalorder %s17, 0
      %p89 = por %p87, %p88
      %p90 = scmp.ne.s32.totalorder %s79, %s82
      %p91 = scmp.eq.s32.totalorder %s22, 1
      %p92 = por %p90, %p91
      %p93 = scmp.ne.s32.totalorder %s82, %s83
      %p94 = scmp.eq.s32.totalorder %s22, 0
      %p95 = por %p93, %p94
      %p96 = scmp.ne.s32.totalorder %s82, %s83
      %p97 = scmp.eq.s32.totalorder %s23, 1
      %p98 = por %p96, %p97
      %p100 = scmp.ne.s32.totalorder %s83, %s99
      %p101 = scmp.eq.s32.totalorder %s23, 0
      %p102 = por %p100, %p101
      %p103 = scmp.le.s32.totalorder 1, %s17
      %p104 = scmp.lt.s32.totalorder %s17, 3
      %p105 = pnand %p103, %p104
      %p106 = pneg %p105
      // Predicated region
      $region9: #{tpu_custom_call.1} parent=5 // pred_check
        _
      $region10: #{tpu_custom_call.1} parent=5 // pred_check_branch
        %108 = sbr.rel (%p105) target = $region12
      $region11: #{tpu_custom_call.1} parent=5 // pred_region
        %s109 = ssub.s32 %s17, 1
      $region12: #{tpu_custom_call.1} parent=5 // pred_fallthru
        _
      %p110 = scmp.lt.s32.totalorder %s17, 2
      // Predicated region
      $region13: #{tpu_custom_call.1} parent=5 // pred_check
        %p111 = pneg %p110
      $region14: #{tpu_custom_call.1} parent=5 // pred_check_branch
        %113 = sbr.rel (%p111) target = $region16
      $region15: #{tpu_custom_call.1} parent=5 // pred_region
        // Predicated region
        $region17: #{tpu_custom_call.1} parent=15 // pred_check
          %p114 = pneg %p37
        $region18: #{tpu_custom_call.1} parent=15 // pred_check_branch
          %116 = sbr.rel (%p114) target = $region20
        $region19: #{tpu_custom_call.1} parent=15 // pred_region
          %s117 = sand.u32 %s27, 1
          %s118 = scalar_lea.sflag [#allocation3], %s117
          %s119 = sand.u32 %s27, 1
          %s120 = smul.addr %s119, 8
          %s121 = scalar_lea.vmem [#allocation2], %s120
          %123 = vsyncadd %s118, 0
          %s124 = smul.addr %s17, 8
          %s125 = scalar_lea.hbm %s0, %s124
          %s127 = sshll.u32 %s125, 4
          %s128 = int_to_ptr.hbm [resolvable:$true] %s127
          %s129 = sshll.u32 %s121, 4
          %s130 = int_to_ptr.vmem [resolvable:$true] %s129
          %132 = dma.hbm_to_vmem [thread:$0]  %s128, 128, %s130, %s118
        $region20: #{tpu_custom_call.1} parent=15 // pred_fallthru
          _
        // Predicated region
        $region21: #{tpu_custom_call.1} parent=15 // pred_check
          %p133 = pneg %p63
        $region22: #{tpu_custom_call.1} parent=15 // pred_check_branch
          %135 = sbr.rel (%p133) target = $region24
        $region23: #{tpu_custom_call.1} parent=15 // pred_region
          %s136 = sand.u32 %s53, 1
          %s137 = scalar_lea.sflag [#allocation6], %s136
          %s138 = sand.u32 %s53, 1
          %s139 = smul.addr %s138, 8
          %s140 = scalar_lea.vmem [#allocation5], %s139
          %142 = vsyncadd %s137, 0
          %s143 = smul.addr %s17, 8
          %s144 = scalar_lea.hbm %s1, %s143
          %s146 = sshll.u32 %s144, 4
          %s147 = int_to_ptr.hbm [resolvable:$true] %s146
          %s148 = sshll.u32 %s140, 4
          %s149 = int_to_ptr.vmem [resolvable:$true] %s148
          %151 = dma.hbm_to_vmem [thread:$0]  %s147, 128, %s149, %s137
        $region24: #{tpu_custom_call.1} parent=15 // pred_fallthru
          _
      $region16: #{tpu_custom_call.1} parent=5 // pred_fallthru
        _
      %p152 = scmp.le.s32.totalorder 1, %s17
      %p153 = scmp.lt.s32.totalorder %s17, 3
      %p154 = pnand %p152, %p153
      %p155 = pneg %p154
      // Predicated region
      $region25: #{tpu_custom_call.1} parent=5 // pred_check
        _
      $region26: #{tpu_custom_call.1} parent=5 // pred_check_branch
        %157 = sbr.rel (%p154) target = $region28
      $region27: #{tpu_custom_call.1} parent=5 // pred_region
        %s158 = ssub.s32 %s17, 1
        %s159 = sand.u32 %s30, 1
        %s160 = scalar_lea.sflag [#allocation3], %s159
        %s161 = sand.u32 %s30, 1
        %s162 = smul.addr %s161, 8
        %s163 = scalar_lea.vmem [#allocation2], %s162
        // Predicated region
        $region29: #{tpu_custom_call.1} parent=27 // pred_check
          %p164 = pneg %p43
        $region30: #{tpu_custom_call.1} parent=27 // pred_check_branch
          %166 = sbr.rel (%p164) target = $region32
        $region31: #{tpu_custom_call.1} parent=27 // pred_region
          %168 = dma.done %s160, 128
        $region32: #{tpu_custom_call.1} parent=27 // pred_fallthru
          _
        %s169 = sand.u32 %s56, 1
        %s170 = scalar_lea.sflag [#allocation6], %s169
        %s171 = sand.u32 %s56, 1
        %s172 = smul.addr %s171, 8
        %s173 = scalar_lea.vmem [#allocation5], %s172
        // Predicated region
        $region33: #{tpu_custom_call.1} parent=27 // pred_check
          %p174 = pneg %p69
        $region34: #{tpu_custom_call.1} parent=27 // pred_check_branch
          %176 = sbr.rel (%p174) target = $region36
        $region35: #{tpu_custom_call.1} parent=27 // pred_region
          %178 = dma.done %s170, 128
        $region36: #{tpu_custom_call.1} parent=27 // pred_fallthru
          _
        %s179 = sand.u32 %s30, 1
        %s180 = scalar_lea.sflag [#allocation3], %s179
        %s181 = sand.u32 %s30, 1
        %s182 = smul.addr %s181, 8
        %s183 = scalar_lea.vmem [#allocation2], %s182
        %p184 = pneg %p43
        %p185 = pneg %p40
        %s186 = sand.u32 %s56, 1
        %s187 = scalar_lea.sflag [#allocation6], %s186
        %s188 = sand.u32 %s56, 1
        %s189 = smul.addr %s188, 8
        %s190 = scalar_lea.vmem [#allocation5], %s189
        %p191 = pneg %p69
        %p192 = pneg %p66
        %p193 = pneg %p95
        %p194 = pneg %p92
        %s195 = sand.u32 %s82, 1
        %s196 = scalar_lea.sflag [#allocation4], %s195
        %s197 = sand.u32 %s82, 1
        %s198 = scalar_lea.vmem [#allocation7], %s197
        %v199 = vld [vmem:[%s163] sm:$0xff]
        %v200 = vld [vmem:[%s173] sm:$0xff]
        %v201 = vsub.f32 %v199, %v200
        %v202 = vand.u32 2147483647, %v201
        %v203 = vadd.f32 %v202, 0.0
        %v204 = vrot.slane %v203, 4
        %v205 = vadd.f32 %v203, %v204
        %v206 = vrot.slane %v205, 2
        %v207 = vadd.f32 %v205, %v206
        %v208 = vrot.slane %v207, 1
        %v209 = vadd.f32 %v207, %v208
        %210 = vst [vmem:[%s198] sm:$0x1] %v209
        %s211 = sand.u32 %s82, 1
        %s212 = scalar_lea.sflag [#allocation4], %s211
        %s213 = sand.u32 %s82, 1
        %s214 = scalar_lea.vmem [#allocation7], %s213
        // Predicated region
        $region37: #{tpu_custom_call.1} parent=27 // pred_check
          %p215 = pneg %p92
        $region38: #{tpu_custom_call.1} parent=27 // pred_check_branch
          %217 = sbr.rel (%p215) target = $region40
        $region39: #{tpu_custom_call.1} parent=27 // pred_region
          %219 = vsyncadd %s212, 0
          %s220 = scalar_lea.hbm %s2, %s22
          %s222 = sshll.u32 %s214, 4
          %s223 = int_to_ptr.vmem [resolvable:$true] %s222
          %s224 = sshll.u32 %s220, 4
          %s225 = int_to_ptr.hbm [resolvable:$true] %s224
          %227 = dma.vmem_to_hbm [thread:$0]  %s223, 16, %s225, %s212
        $region40: #{tpu_custom_call.1} parent=27 // pred_fallthru
          _
      $region28: #{tpu_custom_call.1} parent=5 // pred_fallthru
        _
      %p228 = scmp.le.s32.totalorder 2, %s17
      // Predicated region
      $region41: #{tpu_custom_call.1} parent=5 // pred_check
        %p229 = pneg %p228
      $region42: #{tpu_custom_call.1} parent=5 // pred_check_branch
        %231 = sbr.rel (%p229) target = $region44
      $region43: #{tpu_custom_call.1} parent=5 // pred_region
        %s232 = ssub.s32 %s17, 2
        // Predicated region
        $region45: #{tpu_custom_call.1} parent=43 // pred_check
          %p233 = pneg %p98
        $region46: #{tpu_custom_call.1} parent=43 // pred_check_branch
          %235 = sbr.rel (%p233) target = $region48
        $region47: #{tpu_custom_call.1} parent=43 // pred_region
          %s236 = sand.u32 %s83, 1
          %s237 = scalar_lea.sflag [#allocation4], %s236
          %s238 = sand.u32 %s83, 1
          %s239 = scalar_lea.vmem [#allocation7], %s238
          %241 = dma.done %s237, 16
        $region48: #{tpu_custom_call.1} parent=43 // pred_fallthru
          _
      $region44: #{tpu_custom_call.1} parent=5 // pred_fallthru
        _
    $region6: #{tpu_custom_call.1} parent=1 // loop_footer
      %s21 = sadd.s32 1, %s17
    $region7: #{tpu_custom_call.1} parent=1 // loop_footer_branch
      %16 = sbr.rel target = $region3
    $region8: #{tpu_custom_call.1} parent=1 // loop_exit
      _
    %242 = vsyncpa [#allocation3], 1
    %s243 = scalar_lea.sflag [#allocation3], 1
    %244 = vsyncpa %s243, 1
    %245 = vsyncpa [#allocation6], 1
    %s246 = scalar_lea.sflag [#allocation6], 1
    %247 = vsyncpa %s246, 1
    %248 = vsyncpa [#allocation4], 1
    %s249 = scalar_lea.sflag [#allocation4], 1
    %250 = vsyncpa %s249, 1

</llo_original>
